<compile_context>
chip_gen: v6e
topology: v6e:2x2x1
jax: 0.10.0
libtpu: 0.0.40
codegen_flags: <defaults>
</compile_context>

<pallas_src>
import jax
import jax.numpy as jnp
from jax import lax
from jax.experimental import pallas as pl
from jax.experimental.pallas import tpu as pltpu


_INV_SQRT2 = 0.7071067811865476  # 1/sqrt(2), avoids a per-element divide


def _geglu_kernel(x_ref, w_ref, b_ref, o_ref):
    # x_ref: (tm, K)        input rows, native dtype, fed straight to the MXU
    # w_ref: (K, 2*tn)      fused [value_tile_j || gate_tile_j] weights
    # b_ref: (1, 2*tn)      fused bias for this N tile
    # o_ref: (tm, tn)
    tn = o_ref.shape[-1]
    acc = jnp.dot(x_ref[...], w_ref[...], preferred_element_type=jnp.float32)
    acc = acc + b_ref[...].astype(jnp.float32)
    h = acc[:, :tn]          # value branch
    g = acc[:, tn:]          # gate branch
    # Exact (erf) GELU, matching torch.nn.functional.gelu default.
    gelu_g = 0.5 * g * (1.0 + lax.erf(g * _INV_SQRT2))
    o_ref[...] = (h * gelu_g).astype(o_ref.dtype)


def prepare_geglu_params(weight, bias, *, tn=256):
    """One-time repack of PyTorch nn.Linear(dim_in, 2*dim_out) parameters.

    weight: (2*dim_out, dim_in)   (PyTorch layout)
    bias:   (2*dim_out,)
    Returns (w_fused, b_fused, dim_out) where the fused weight is
    (dim_in, n_tiles * 2*tn) with columns grouped per N-tile as
    [value_tile_j || gate_tile_j].  Do this once outside the hot path so the
    per-call kernel sees no transpose / slice traffic on the full weight.
    """
    two_dout, dim_in = weight.shape
    dim_out = two_dout // 2

    w_x = weight[:dim_out, :].T          # (dim_in, dim_out)  value branch
    w_g = weight[dim_out:, :].T          # (dim_in, dim_out)  gate branch
    b_x = bias[:dim_out]
    b_g = bias[dim_out:]

    n_tiles = pl.cdiv(dim_out, tn)
    n_pad = n_tiles * tn
    if n_pad != dim_out:
        pad = n_pad - dim_out
        w_x = jnp.pad(w_x, ((0, 0), (0, pad)))
        w_g = jnp.pad(w_g, ((0, 0), (0, pad)))
        b_x = jnp.pad(b_x, (0, pad))
        b_g = jnp.pad(b_g, (0, pad))

    # Interleave per N tile: (dim_in, n_tiles, 2*tn) -> (dim_in, n_tiles*2*tn)
    w_fused = jnp.concatenate(
        [w_x.reshape(dim_in, n_tiles, tn), w_g.reshape(dim_in, n_tiles, tn)],
        axis=-1,
    ).reshape(dim_in, n_tiles * 2 * tn)
    b_fused = jnp.concatenate(
        [b_x.reshape(n_tiles, tn), b_g.reshape(n_tiles, tn)],
        axis=-1,
    ).reshape(1, n_tiles * 2 * tn)
    return w_fused, b_fused, dim_out


def geglu(x, w_fused, b_fused, dim_out, *, tm=256, tn=256):
    """GEGLU forward with pre-packed params.

    x: (..., dim_in);  returns (..., dim_out).
    """
    *lead, dim_in = x.shape
    assert w_fused.shape[0] == dim_in
    n_pad = w_fused.shape[1] // 2
    assert n_pad % tn == 0

    M = 1
    for d in lead:
        M *= d
    x2 = x.reshape(M, dim_in)

    # Arbitrary M: ceil-divide grid and zero-pad the tail tile.
    m_tiles = pl.cdiv(M, tm)
    m_pad = m_tiles * tm
    if m_pad != M:
        x2 = jnp.pad(x2, ((0, m_pad - M), (0, 0)))

    grid = (m_tiles, n_pad // tn)

    out = pl.pallas_call(
        _geglu_kernel,
        out_shape=jax.ShapeDtypeStruct((m_pad, n_pad), x.dtype),
        grid=grid,
        in_specs=[
            pl.BlockSpec((tm, dim_in), lambda i, j: (i, 0)),
            pl.BlockSpec((dim_in, 2 * tn), lambda i, j: (0, j)),
            pl.BlockSpec((1, 2 * tn), lambda i, j: (0, j)),
        ],
        out_specs=pl.BlockSpec((tm, tn), lambda i, j: (i, j)),
        compiler_params=pltpu.CompilerParams(
            dimension_semantics=("parallel", "parallel"),
            vmem_limit_bytes=48 * 1024 * 1024,
        ),
    )(x2, w_fused, b_fused)

    out = out[:M, :dim_out]
    return out.reshape(*lead, dim_out)


def geglu_ref(x, weight, bias):
    proj = x @ weight.T + bias
    dim_out = weight.shape[0] // 2
    h, g = proj[..., :dim_out], proj[..., dim_out:]
    return h * jax.nn.gelu(g, approximate=False)


if __name__ == "__main__":
    key = jax.random.PRNGKey(0)
    k1, k2, k3 = jax.random.split(key, 3)

    batch, seq, dim_in, dim_out = 2, 8, 32, 32
    x = jax.random.normal(k1, (batch, seq, dim_in), dtype=jnp.float32)
    # Deterministic synthetic nn.Linear(dim_in, 2*dim_out) params.
    weight = jax.random.normal(k2, (2 * dim_out, dim_in), dtype=jnp.float32) * 0.05
    bias = jax.random.normal(k3, (2 * dim_out,), dtype=jnp.float32) * 0.05

    # One-time parameter repack (kept out of the per-call hot path).
    w_fused, b_fused, dout = prepare_geglu_params(weight, bias, tn=256)

    out = geglu(x, w_fused, b_fused, dout, tm=256, tn=256)
    out = jax.block_until_ready(out)

    ref = geglu_ref(x, weight, bias)
    assert out.shape == (batch, seq, dim_out)
    assert jnp.allclose(out, ref, atol=1e-5, rtol=1e-5), "mismatch vs reference"

    print("KERNEL_OK")
</pallas_src>

<mosaic_0001>
module attributes {stable_mosaic.version = 11 : i64} {
  func.func @_geglu_kernel(%arg0: i32, %arg1: i32, %arg2: memref<256x32xf32, #tpu.memory_space<vmem>>, %arg3: memref<32x512xf32, #tpu.memory_space<vmem>>, %arg4: memref<1x512xf32, #tpu.memory_space<vmem>>, %arg5: memref<256x256xf32, #tpu.memory_space<vmem>>) attributes {dimension_semantics = [#tpu.dimension_semantics<parallel>, #tpu.dimension_semantics<parallel>], iteration_bounds = array<i64: 1, 1>, scalar_prefetch = 0 : i64, scratch_operands = 0 : i64, tpu.core_type = #tpu.core_type<tc>, window_params = [{transform_indices = @transform_0, window_bounds = array<i64: 256, 32>}, {transform_indices = @transform_1, window_bounds = array<i64: 32, 512>}, {transform_indices = @transform_2, window_bounds = array<i64: 1, 512>}, {transform_indices = @transform_3, window_bounds = array<i64: 256, 256>}]} {
    %c0 = arith.constant 0 : index
    %c0_0 = arith.constant 0 : index
    %0 = vector.load %arg2[%c0, %c0_0] : memref<256x32xf32, #tpu.memory_space<vmem>>, vector<256x32xf32>
    %c0_1 = arith.constant 0 : index
    %c0_2 = arith.constant 0 : index
    %1 = vector.load %arg3[%c0_1, %c0_2] : memref<32x512xf32, #tpu.memory_space<vmem>>, vector<32x512xf32>
    %cst = arith.constant dense<0.000000e+00> : vector<256x512xf32>
    %2 = tpu.matmul %0, %1, %cst {dimension_numbers = #tpu.dot_dimension_numbers<[1], [0], [0], [1], [0, 0, 1, 1], [], []>} : vector<256x32xf32>, vector<32x512xf32>, vector<256x512xf32> -> vector<256x512xf32>
    %c0_3 = arith.constant 0 : index
    %c0_4 = arith.constant 0 : index
    %3 = vector.load %arg4[%c0_3, %c0_4] : memref<1x512xf32, #tpu.memory_space<vmem>>, vector<1x512xf32>
    %4 = vector.broadcast %3 : vector<1x512xf32> to vector<256x512xf32>
    %5 = arith.addf %2, %4 : vector<256x512xf32>
    %6 = vector.extract_strided_slice %5 {offsets = [0, 0], sizes = [256, 256], strides = [1, 1]} : vector<256x512xf32> to vector<256x256xf32>
    %7 = vector.extract_strided_slice %5 {offsets = [0, 256], sizes = [256, 256], strides = [1, 1]} : vector<256x512xf32> to vector<256x256xf32>
    %cst_5 = arith.constant 5.000000e-01 : f32
    %8 = vector.broadcast %cst_5 : f32 to vector<256x256xf32>
    %9 = arith.mulf %8, %7 : vector<256x256xf32>
    %cst_6 = arith.constant 0.707106769 : f32
    %10 = vector.broadcast %cst_6 : f32 to vector<256x256xf32>
    %11 = arith.mulf %7, %10 : vector<256x256xf32>
    %12 = math.erf %11 : vector<256x256xf32>
    %cst_7 = arith.constant 1.000000e+00 : f32
    %13 = vector.broadcast %cst_7 : f32 to vector<256x256xf32>
    %14 = arith.addf %13, %12 : vector<256x256xf32>
    %15 = arith.mulf %9, %14 : vector<256x256xf32>
    %16 = arith.mulf %6, %15 : vector<256x256xf32>
    %c0_8 = arith.constant 0 : index
    %c0_9 = arith.constant 0 : index
    %17 = vector.load %arg5[%c0_8, %c0_9] : memref<256x256xf32, #tpu.memory_space<vmem>>, vector<256x256xf32>
    tpu.vector_store %arg5[%c0_8, %c0_9], %16 {strides = array<i32>} : memref<256x256xf32, #tpu.memory_space<vmem>>, vector<256x256xf32>,
    return
  }
  func.func @transform_0(%arg0: i32, %arg1: i32) -> (i32, i32) {
    %c0_i32 = arith.constant 0 : i32
    %c0_i32_0 = arith.constant 0 : i32
    return %arg0, %c0_i32 : i32, i32
  }
  func.func @transform_1(%arg0: i32, %arg1: i32) -> (i32, i32) {
    %c0_i32 = arith.constant 0 : i32
    %c0_i32_0 = arith.constant 0 : i32
    return %c0_i32, %arg1 : i32, i32
  }
  func.func @transform_2(%arg0: i32, %arg1: i32) -> (i32, i32) {
    %c0_i32 = arith.constant 0 : i32
    %c0_i32_0 = arith.constant 0 : i32
    return %c0_i32, %arg1 : i32, i32
  }
  func.func @transform_3(%arg0: i32, %arg1: i32) -> (i32, i32) {
    %c0_i32 = arith.constant 0 : i32
    return %arg0, %arg1 : i32, i32
  }
}

</mosaic_0001>

<llo_original>
// kernel: tpu_custom_call.1
$region0: #{tpu_custom_call.1}
  #allocation0 [shape = 'u32[]', space=smem, size = 0x4, offset = 0x4, fixed_abs, tag = 'smem constant byte address 0x4 - core index']
  #allocation1 [shape = 'u32[144,128]{1,0:T(1,128)}', space=vmem, size = 0x12000, scoped, tag = 'internal scratch']
  %s0 = inlined_call_operand.vmem [shape: f32[256,32], index: 0, kind: input, shape index: {}]
  %s1 = inlined_call_operand.vmem [shape: f32[32,512], index: 1, kind: input, shape index: {}]
  %s2 = inlined_call_operand.vmem [shape: f32[1,512], index: 2, kind: input, shape index: {}]
  %s3 = inlined_call_operand.hbm [shape: f32[256,256], index: 3, kind: output, shape index: {}]
  %s4 = sld [smem:[#allocation0]]
  $region22: #{tpu_custom_call.1} parent=0
    _
  %s6 = ssub.s32 1, %s4
  %s7 = scalar_select 0, %s6, %s4
  $region1: #{tpu_custom_call.1} parent=0
    #allocation2 [shape = 'u8[262144]{0}', space=vmem, size = 0x40000, scoped, tag = 'output window, operand 0, single buffered']
    #allocation3 [shape = 's32[1]{0}', space=sflag, size = 0x4, scoped, tag = 'scoped memory for tpu_custom_call.1']
    %8 = vsyncpa [#allocation3], 0
    // Predicated region
    $region2: #{tpu_custom_call.1} parent=1 // pred_check
      _
    $region3: #{tpu_custom_call.1} parent=1 // pred_check_branch
      %10 = sbr.rel (0) target = $region5
    $region4: #{tpu_custom_call.1} parent=1 // pred_region
      _
    $region5: #{tpu_custom_call.1} parent=1 // pred_fallthru
      _
    // Predicated region
    $region6: #{tpu_custom_call.1} parent=1 // pred_check
      _
    $region7: #{tpu_custom_call.1} parent=1 // pred_check_branch
      %12 = sbr.rel (0) target = $region9
    $region8: #{tpu_custom_call.1} parent=1 // pred_region
      _
    $region9: #{tpu_custom_call.1} parent=1 // pred_fallthru
      _
    // Predicated region
    $region10: #{tpu_custom_call.1} parent=1 // pred_check
      _
    $region11: #{tpu_custom_call.1} parent=1 // pred_check_branch
      %14 = sbr.rel (0) target = $region13
    $region12: #{tpu_custom_call.1} parent=1 // pred_region
      _
    $region13: #{tpu_custom_call.1} parent=1 // pred_fallthru
      _
    %v15 = vld [vmem:[%s0] sm:$0xff]
    %v16 = vld [vmem:[%s0 + $0x8] sm:$0xff]
    %v17 = vld [vmem:[%s0 + $0x10] sm:$0xff]
    %v18 = vld [vmem:[%s0 + $0x18] sm:$0xff]
    %v19 = vld [vmem:[%s0 + $0x20] sm:$0xff]
    %v20 = vld [vmem:[%s0 + $0x28] sm:$0xff]
    %v21 = vld [vmem:[%s0 + $0x30] sm:$0xff]
    %v22 = vld [vmem:[%s0 + $0x38] sm:$0xff]
    %v23 = vld [vmem:[%s0 + $0x40] sm:$0xff]
    %v24 = vld [vmem:[%s0 + $0x48] sm:$0xff]
    %v25 = vld [vmem:[%s0 + $0x50] sm:$0xff]
    %v26 = vld [vmem:[%s0 + $0x58] sm:$0xff]
    %v27 = vld [vmem:[%s0 + $0x60] sm:$0xff]
    %v28 = vld [vmem:[%s0 + $0x68] sm:$0xff]
    %v29 = vld [vmem:[%s0 + $0x70] sm:$0xff]
    %v30 = vld [vmem:[%s0 + $0x78] sm:$0xff]
    %v31 = vld [vmem:[%s0 + $0x80] sm:$0xff]
    %v32 = vld [vmem:[%s0 + $0x88] sm:$0xff]
    %v33 = vld [vmem:[%s0 + $0x90] sm:$0xff]
    %v34 = vld [vmem:[%s0 + $0x98] sm:$0xff]
    %v35 = vld [vmem:[%s0 + $0xa0] sm:$0xff]
    %v36 = vld [vmem:[%s0 + $0xa8] sm:$0xff]
    %v37 = vld [vmem:[%s0 + $0xb0] sm:$0xff]
    %v38 = vld [vmem:[%s0 + $0xb8] sm:$0xff]
    %v39 = vld [vmem:[%s0 + $0xc0] sm:$0xff]
    %v40 = vld [vmem:[%s0 + $0xc8] sm:$0xff]
    %v41 = vld [vmem:[%s0 + $0xd0] sm:$0xff]
    %v42 = vld [vmem:[%s0 + $0xd8] sm:$0xff]
    %v43 = vld [vmem:[%s0 + $0xe0] sm:$0xff]
    %v44 = vld [vmem:[%s0 + $0xe8] sm:$0xff]
    %v45 = vld [vmem:[%s0 + $0xf0] sm:$0xff]
    %v46 = vld [vmem:[%s0 + $0xf8] sm:$0xff]
    %v47 = vld [vmem:[%s1] sm:$0xff]
    %v48 = vld [vmem:[%s1 + $0x8] sm:$0xff]
    %v49 = vld [vmem:[%s1 + $0x10] sm:$0xff]
    %v50 = vld [vmem:[%s1 + $0x18] sm:$0xff]
    %v51 = vld [vmem:[%s1 + $0x20] sm:$0xff]
    %v52 = vld [vmem:[%s1 + $0x28] sm:$0xff]
    %v53 = vld [vmem:[%s1 + $0x30] sm:$0xff]
    %v54 = vld [vmem:[%s1 + $0x38] sm:$0xff]
    %v55 = vld [vmem:[%s1 + $0x40] sm:$0xff]
    %v56 = vld [vmem:[%s1 + $0x48] sm:$0xff]
    %v57 = vld [vmem:[%s1 + $0x50] sm:$0xff]
    %v58 = vld [vmem:[%s1 + $0x58] sm:$0xff]
    %v59 = vld [vmem:[%s1 + $0x60] sm:$0xff]
    %v60 = vld [vmem:[%s1 + $0x68] sm:$0xff]
    %v61 = vld [vmem:[%s1 + $0x70] sm:$0xff]
    %v62 = vld [vmem:[%s1 + $0x78] sm:$0xff]
    %v63 = vld [vmem:[%s2] sm:$0xf]
    %v65 = vlaneseq
    %v66 = vshrl.u32 %v65, 7
    %v67 = vsub.s32 0, %v66
    %v68 = vrot.slane %v63, %v67
    %v69 = vlaneseq
    %v70 = vshrl.u32 %v69, 7
    %v71 = vsub.s32 1, %v70
    %v72 = vrot.slane %v63, %v71
    %v73 = vlaneseq
    %v74 = vshrl.u32 %v73, 7
    %v75 = vsub.s32 2, %v74
    %v76 = vrot.slane %v63, %v75
    %v77 = vlaneseq
    %v78 = vshrl.u32 %v77, 7
    %v79 = vsub.s32 3, %v78
    %v80 = vrot.slane %v63, %v79
    %vm85 = vcmask 261120
    %v87 = vsel %vm85, %v15, 0
    %v90 = vsel %vm85, %v16, 0
    %v93 = vsel %vm85, %v17, 0
    %v96 = vsel %vm85, %v18, 0
    %v99 = vsel %vm85, %v19, 0
    %v102 = vsel %vm85, %v20, 0
    %v105 = vsel %vm85, %v21, 0
    %v108 = vsel %vm85, %v22, 0
    %v111 = vsel %vm85, %v23, 0
    %v114 = vsel %vm85, %v24, 0
    %v117 = vsel %vm85, %v25, 0
    %v120 = vsel %vm85, %v26, 0
    %v123 = vsel %vm85, %v27, 0
    %v126 = vsel %vm85, %v28, 0
    %v129 = vsel %vm85, %v29, 0
    %v132 = vsel %vm85, %v30, 0
    %v135 = vsel %vm85, %v31, 0
    %v138 = vsel %vm85, %v32, 0
    %v141 = vsel %vm85, %v33, 0
    %v144 = vsel %vm85, %v34, 0
    %v147 = vsel %vm85, %v35, 0
    %v150 = vsel %vm85, %v36, 0
    %v153 = vsel %vm85, %v37, 0
    %v156 = vsel %vm85, %v38, 0
    %v159 = vsel %vm85, %v39, 0
    %v162 = vsel %vm85, %v40, 0
    %v165 = vsel %vm85, %v41, 0
    %v168 = vsel %vm85, %v42, 0
    %v171 = vsel %vm85, %v43, 0
    %v174 = vsel %vm85, %v44, 0
    %v177 = vsel %vm85, %v45, 0
    %v180 = vsel %vm85, %v46, 0
    %182 = vmatprep.subr.mxu0 0.0
    %183 = vmatpush1.msra.mxu0 0.0
    %184 = vmatprep.subr.mxu0 0.0
    %185 = vmatpush1.msra.mxu0 0.0
    %186 = vmatprep.subr.mxu0 0.0
    %187 = vmatpush1.msra.mxu0 0.0
    %188 = vmatprep.subr.mxu0 0.0
    %189 = vmatpush1.msra.mxu0 0.0
    %190 = vmatprep.subr.mxu0 0.0
    %191 = vmatpush1.msra.mxu0 0.0
    %192 = vmatprep.subr.mxu0 0.0
    %193 = vmatpush1.msra.mxu0 0.0
    %194 = vmatprep.subr.mxu0 0.0
    %195 = vmatpush1.msra.mxu0 0.0
    %196 = vmatprep.subr.mxu0 0.0
    %197 = vmatpush1.msra.mxu0 0.0
    %198 = vmatprep.subr.mxu0 0.0
    %199 = vmatpush1.msra.mxu0 0.0
    %200 = vmatprep.subr.mxu0 0.0
    %201 = vmatpush1.msra.mxu0 0.0
    %202 = vmatprep.subr.mxu0 0.0
    %203 = vmatpush1.msra.mxu0 0.0
    %204 = vmatprep.subr.mxu0 0.0
    %205 = vmatpush1.msra.mxu0 0.0
    %206 = vmatprep.subr.mxu0 %v60
    %207 = vmatpush1.msra.mxu0 %v59
    %208 = vmatprep.subr.mxu0 %v56
    %209 = vmatpush1.msra.mxu0 %v55
    %210 = vmatprep.subr.mxu0 %v52
    %211 = vmatpush1.msra.mxu0 %v51
    %212 = vmatprep.subr.mxu0 %v48
    %213 = vmatpush1.msra.mxu0 %v47
    %214 = vmatprep.subr.mxu0 0.0
    %215 = vmatpush2.msra.mxu0 0.0
    %216 = vmatprep.subr.mxu0 0.0
    %217 = vmatpush2.msra.mxu0 0.0
    %218 = vmatprep.subr.mxu0 0.0
    %219 = vmatpush2.msra.mxu0 0.0
    %220 = vmatprep.subr.mxu0 0.0
    %221 = vmatpush2.msra.mxu0 0.0
    %222 = vmatprep.subr.mxu0 0.0
    %223 = vmatpush2.msra.mxu0 0.0
    %224 = vmatprep.subr.mxu0 0.0
    %225 = vmatpush2.msra.mxu0 0.0
    %226 = vmatprep.subr.mxu0 0.0
    %227 = vmatpush2.msra.mxu0 0.0
    %228 = vmatprep.subr.mxu0 0.0
    %229 = vmatpush2.msra.mxu0 0.0
    %230 = vmatprep.subr.mxu0 0.0
    %231 = vmatpush2.msra.mxu0 0.0
    %232 = vmatprep.subr.mxu0 0.0
    %233 = vmatpush2.msra.mxu0 0.0
    %234 = vmatprep.subr.mxu0 0.0
    %235 = vmatpush2.msra.mxu0 0.0
    %236 = vmatprep.subr.mxu0 0.0
    %237 = vmatpush2.msra.mxu0 0.0
    %238 = vmatprep.subr.mxu0 0.0
    %239 = vmatpush2.msra.mxu0 0.0
    %240 = vmatprep.subr.mxu0 0.0
    %241 = vmatpush2.msra.mxu0 0.0
    %242 = vmatprep.subr.mxu0 0.0
    %243 = vmatpush2.msra.mxu0 0.0
    %244 = vmatprep.subr.mxu0 0.0
    %245 = vmatpush2.msra.mxu0 0.0
    %246 = vmatprep.mubr.f32.mxu0 0.0
    %247 = vmatmul.mubr.f32.gmra.mxu0 %v87
    %v248 = vpop.f32.mrf.mxu0
    %v249 = vadd.f32 %v68, %v248
    %v250 = vpop.f32.mrf.mxu0
    %v251 = vadd.f32 %v72, %v250
    %252 = vmatprep.mubr.f32.mxu0 0.0
    %253 = vmatmul.mubr.f32.gmra.mxu0 %v90
    %v254 = vpop.f32.mrf.mxu0
    %v255 = vadd.f32 %v68, %v254
    %v256 = vpop.f32.mrf.mxu0
    %v257 = vadd.f32 %v72, %v256
    %258 = vmatprep.mubr.f32.mxu0 0.0
    %259 = vmatmul.mubr.f32.gmra.mxu0 %v93
    %v260 = vpop.f32.mrf.mxu0
    %v261 = vadd.f32 %v68, %v260
    %v262 = vpop.f32.mrf.mxu0
    %v263 = vadd.f32 %v72, %v262
    %264 = vmatprep.mubr.f32.mxu0 0.0
    %265 = vmatmul.mubr.f32.gmra.mxu0 %v96
    %v266 = vpop.f32.mrf.mxu0
    %v267 = vadd.f32 %v68, %v266
    %v268 = vpop.f32.mrf.mxu0
    %v269 = vadd.f32 %v72, %v268
    %270 = vmatprep.mubr.f32.mxu0 0.0
    %271 = vmatmul.mubr.f32.gmra.mxu0 %v99
    %v272 = vpop.f32.mrf.mxu0
    %v273 = vadd.f32 %v68, %v272
    %v274 = vpop.f32.mrf.mxu0
    %v275 = vadd.f32 %v72, %v274
    %276 = vmatprep.mubr.f32.mxu0 0.0
    %277 = vmatmul.mubr.f32.gmra.mxu0 %v102
    %v278 = vpop.f32.mrf.mxu0
    %v279 = vadd.f32 %v68, %v278
    %v280 = vpop.f32.mrf.mxu0
    %v281 = vadd.f32 %v72, %v280
    %282 = vmatprep.mubr.f32.mxu0 0.0
    %283 = vmatmul.mubr.f32.gmra.mxu0 %v105
    %v284 = vpop.f32.mrf.mxu0
    %v285 = vadd.f32 %v68, %v284
    %v286 = vpop.f32.mrf.mxu0
    %v287 = vadd.f32 %v72, %v286
    %288 = vmatprep.mubr.f32.mxu0 0.0
    %289 = vmatmul.mubr.f32.gmra.mxu0 %v108
    %v290 = vpop.f32.mrf.mxu0
    %v291 = vadd.f32 %v68, %v290
    %v292 = vpop.f32.mrf.mxu0
    %v293 = vadd.f32 %v72, %v292
    %294 = vmatprep.mubr.f32.mxu0 0.0
    %295 = vmatmul.mubr.f32.gmra.mxu0 %v111
    %v296 = vpop.f32.mrf.mxu0
    %v297 = vadd.f32 %v68, %v296
    %v298 = vpop.f32.mrf.mxu0
    %v299 = vadd.f32 %v72, %v298
    %300 = vmatprep.mubr.f32.mxu0 0.0
    %301 = vmatmul.mubr.f32.gmra.mxu0 %v114
    %v302 = vpop.f32.mrf.mxu0
    %v303 = vadd.f32 %v68, %v302
    %v304 = vpop.f32.mrf.mxu0
    %v305 = vadd.f32 %v72, %v304
    %306 = vmatprep.mubr.f32.mxu0 0.0
    %307 = vmatmul.mubr.f32.gmra.mxu0 %v117
    %v308 = vpop.f32.mrf.mxu0
    %v309 = vadd.f32 %v68, %v308
    %v310 = vpop.f32.mrf.mxu0
    %v311 = vadd.f32 %v72, %v310
    %312 = vmatprep.mubr.f32.mxu0 0.0
    %313 = vmatmul.mubr.f32.gmra.mxu0 %v120
    %v314 = vpop.f32.mrf.mxu0
    %v315 = vadd.f32 %v68, %v314
    %v316 = vpop.f32.mrf.mxu0
    %v317 = vadd.f32 %v72, %v316
    %318 = vmatprep.mubr.f32.mxu0 0.0
    %319 = vmatmul.mubr.f32.gmra.mxu0 %v123
    %v320 = vpop.f32.mrf.mxu0
    %v321 = vadd.f32 %v68, %v320
    %v322 = vpop.f32.mrf.mxu0
    %v323 = vadd.f32 %v72, %v322
    %324 = vmatprep.mubr.f32.mxu0 0.0
    %325 = vmatmul.mubr.f32.gmra.mxu0 %v126
    %v326 = vpop.f32.mrf.mxu0
    %v327 = vadd.f32 %v68, %v326
    %v328 = vpop.f32.mrf.mxu0
    %v329 = vadd.f32 %v72, %v328
    %330 = vmatprep.mubr.f32.mxu0 0.0
    %331 = vmatmul.mubr.f32.gmra.mxu0 %v129
    %v332 = vpop.f32.mrf.mxu0
    %v333 = vadd.f32 %v68, %v332
    %v334 = vpop.f32.mrf.mxu0
    %v335 = vadd.f32 %v72, %v334
    %336 = vmatprep.mubr.f32.mxu0 0.0
    %337 = vmatmul.mubr.f32.gmra.mxu0 %v132
    %v338 = vpop.f32.mrf.mxu0
    %v339 = vadd.f32 %v68, %v338
    %v340 = vpop.f32.mrf.mxu0
    %v341 = vadd.f32 %v72, %v340
    %342 = vmatprep.mubr.f32.mxu0 0.0
    %343 = vmatmul.mubr.f32.gmra.mxu0 %v135
    %v344 = vpop.f32.mrf.mxu0
    %v345 = vadd.f32 %v68, %v344
    %v346 = vpop.f32.mrf.mxu0
    %v347 = vadd.f32 %v72, %v346
    %348 = vmatprep.mubr.f32.mxu0 0.0
    %349 = vmatmul.mubr.f32.gmra.mxu0 %v138
    %v350 = vpop.f32.mrf.mxu0
    %v351 = vadd.f32 %v68, %v350
    %v352 = vpop.f32.mrf.mxu0
    %v353 = vadd.f32 %v72, %v352
    %354 = vmatprep.mubr.f32.mxu0 0.0
    %355 = vmatmul.mubr.f32.gmra.mxu0 %v141
    %v356 = vpop.f32.mrf.mxu0
    %v357 = vadd.f32 %v68, %v356
    %v358 = vpop.f32.mrf.mxu0
    %v359 = vadd.f32 %v72, %v358
    %360 = vmatprep.mubr.f32.mxu0 0.0
    %361 = vmatmul.mubr.f32.gmra.mxu0 %v144
    %v362 = vpop.f32.mrf.mxu0
    %v363 = vadd.f32 %v68, %v362
    %v364 = vpop.f32.mrf.mxu0
    %v365 = vadd.f32 %v72, %v364
    %366 = vmatprep.mubr.f32.mxu0 0.0
    %367 = vmatmul.mubr.f32.gmra.mxu0 %v147
    %v368 = vpop.f32.mrf.mxu0
    %v369 = vadd.f32 %v68, %v368
    %v370 = vpop.f32.mrf.mxu0
    %v371 = vadd.f32 %v72, %v370
    %372 = vmatprep.mubr.f32.mxu0 0.0
    %373 = vmatmul.mubr.f32.gmra.mxu0 %v150
    %v374 = vpop.f32.mrf.mxu0
    %v375 = vadd.f32 %v68, %v374
    %v376 = vpop.f32.mrf.mxu0
    %v377 = vadd.f32 %v72, %v376
    %378 = vmatprep.mubr.f32.mxu0 0.0
    %379 = vmatmul.mubr.f32.gmra.mxu0 %v153
    %v380 = vpop.f32.mrf.mxu0
    %v381 = vadd.f32 %v68, %v380
    %v382 = vpop.f32.mrf.mxu0
    %v383 = vadd.f32 %v72, %v382
    %384 = vmatprep.mubr.f32.mxu0 0.0
    %385 = vmatmul.mubr.f32.gmra.mxu0 %v156
    %v386 = vpop.f32.mrf.mxu0
    %v387 = vadd.f32 %v68, %v386
    %v388 = vpop.f32.mrf.mxu0
    %v389 = vadd.f32 %v72, %v388
    %390 = vmatprep.mubr.f32.mxu0 0.0
    %391 = vmatmul.mubr.f32.gmra.mxu0 %v159
    %v392 = vpop.f32.mrf.mxu0
    %v393 = vadd.f32 %v68, %v392
    %v394 = vpop.f32.mrf.mxu0
    %v395 = vadd.f32 %v72, %v394
    %396 = vmatprep.mubr.f32.mxu0 0.0
    %397 = vmatmul.mubr.f32.gmra.mxu0 %v162
    %v398 = vpop.f32.mrf.mxu0
    %v399 = vadd.f32 %v68, %v398
    %v400 = vpop.f32.mrf.mxu0
    %v401 = vadd.f32 %v72, %v400
    %402 = vmatprep.mubr.f32.mxu0 0.0
    %403 = vmatmul.mubr.f32.gmra.mxu0 %v165
    %v404 = vpop.f32.mrf.mxu0
    %v405 = vadd.f32 %v68, %v404
    %v406 = vpop.f32.mrf.mxu0
    %v407 = vadd.f32 %v72, %v406
    %408 = vmatprep.mubr.f32.mxu0 0.0
    %409 = vmatmul.mubr.f32.gmra.mxu0 %v168
    %v410 = vpop.f32.mrf.mxu0
    %v411 = vadd.f32 %v68, %v410
    %v412 = vpop.f32.mrf.mxu0
    %v413 = vadd.f32 %v72, %v412
    %414 = vmatprep.mubr.f32.mxu0 0.0
    %415 = vmatmul.mubr.f32.gmra.mxu0 %v171
    %v416 = vpop.f32.mrf.mxu0
    %v417 = vadd.f32 %v68, %v416
    %v418 = vpop.f32.mrf.mxu0
    %v419 = vadd.f32 %v72, %v418
    %420 = vmatprep.mubr.f32.mxu0 0.0
    %421 = vmatmul.mubr.f32.gmra.mxu0 %v174
    %v422 = vpop.f32.mrf.mxu0
    %v423 = vadd.f32 %v68, %v422
    %v424 = vpop.f32.mrf.mxu0
    %v425 = vadd.f32 %v72, %v424
    %426 = vmatprep.mubr.f32.mxu0 0.0
    %427 = vmatmul.mubr.f32.gmra.mxu0 %v177
    %v428 = vpop.f32.mrf.mxu0
    %v429 = vadd.f32 %v68, %v428
    %v430 = vpop.f32.mrf.mxu0
    %v431 = vadd.f32 %v72, %v430
    %432 = vmatprep.mubr.f32.mxu0 0.0
    %433 = vmatmul.mubr.f32.gmra.mxu0 %v180
    %v434 = vpop.f32.mrf.mxu0
    %v435 = vadd.f32 %v68, %v434
    %v436 = vpop.f32.mrf.mxu0
    %v437 = vadd.f32 %v72, %v436
    %438 = vdwg.mxu0
    %439 = vmatprep.subr.mxu0 0.0
    %440 = vmatpush1.msra.mxu0 0.0
    %441 = vmatprep.subr.mxu0 0.0
    %442 = vmatpush1.msra.mxu0 0.0
    %443 = vmatprep.subr.mxu0 0.0
    %444 = vmatpush1.msra.mxu0 0.0
    %445 = vmatprep.subr.mxu0 0.0
    %446 = vmatpush1.msra.mxu0 0.0
    %447 = vmatprep.subr.mxu0 0.0
    %448 = vmatpush1.msra.mxu0 0.0
    %449 = vmatprep.subr.mxu0 0.0
    %450 = vmatpush1.msra.mxu0 0.0
    %451 = vmatprep.subr.mxu0 0.0
    %452 = vmatpush1.msra.mxu0 0.0
    %453 = vmatprep.subr.mxu0 0.0
    %454 = vmatpush1.msra.mxu0 0.0
    %455 = vmatprep.subr.mxu0 0.0
    %456 = vmatpush1.msra.mxu0 0.0
    %457 = vmatprep.subr.mxu0 0.0
    %458 = vmatpush1.msra.mxu0 0.0
    %459 = vmatprep.subr.mxu0 0.0
    %460 = vmatpush1.msra.mxu0 0.0
    %461 = vmatprep.subr.mxu0 0.0
    %462 = vmatpush1.msra.mxu0 0.0
    %463 = vmatprep.subr.mxu0 %v62
    %464 = vmatpush1.msra.mxu0 %v61
    %465 = vmatprep.subr.mxu0 %v58
    %466 = vmatpush1.msra.mxu0 %v57
    %467 = vmatprep.subr.mxu0 %v54
    %468 = vmatpush1.msra.mxu0 %v53
    %469 = vmatprep.subr.mxu0 %v50
    %470 = vmatpush1.msra.mxu0 %v49
    %471 = vmatprep.subr.mxu0 0.0
    %472 = vmatpush2.msra.mxu0 0.0
    %473 = vmatprep.subr.mxu0 0.0
    %474 = vmatpush2.msra.mxu0 0.0
    %475 = vmatprep.subr.mxu0 0.0
    %476 = vmatpush2.msra.mxu0 0.0
    %477 = vmatprep.subr.mxu0 0.0
    %478 = vmatpush2.msra.mxu0 0.0
    %479 = vmatprep.subr.mxu0 0.0
    %480 = vmatpush2.msra.mxu0 0.0
    %481 = vmatprep.subr.mxu0 0.0
    %482 = vmatpush2.msra.mxu0 0.0
    %483 = vmatprep.subr.mxu0 0.0
    %484 = vmatpush2.msra.mxu0 0.0
    %485 = vmatprep.subr.mxu0 0.0
    %486 = vmatpush2.msra.mxu0 0.0
    %487 = vmatprep.subr.mxu0 0.0
    %488 = vmatpush2.msra.mxu0 0.0
    %489 = vmatprep.subr.mxu0 0.0
    %490 = vmatpush2.msra.mxu0 0.0
    %491 = vmatprep.subr.mxu0 0.0
    %492 = vmatpush2.msra.mxu0 0.0
    %493 = vmatprep.subr.mxu0 0.0
    %494 = vmatpush2.msra.mxu0 0.0
    %495 = vmatprep.subr.mxu0 0.0
    %496 = vmatpush2.msra.mxu0 0.0
    %497 = vmatprep.subr.mxu0 0.0
    %498 = vmatpush2.msra.mxu0 0.0
    %499 = vmatprep.subr.mxu0 0.0
    %500 = vmatpush2.msra.mxu0 0.0
    %501 = vmatprep.subr.mxu0 0.0
    %502 = vmatpush2.msra.mxu0 0.0
    %503 = vmatprep.mubr.f32.mxu0 0.0
    %504 = vmatmul.mubr.f32.gmra.mxu0 %v87
    %v505 = vpop.f32.mrf.mxu0
    %v506 = vadd.f32 %v76, %v505
    %v507 = vpop.f32.mrf.mxu0
    %v508 = vadd.f32 %v80, %v507
    %509 = vmatprep.mubr.f32.mxu0 0.0
    %510 = vmatmul.mubr.f32.gmra.mxu0 %v90
    %v511 = vpop.f32.mrf.mxu0
    %v512 = vadd.f32 %v76, %v511
    %v513 = vpop.f32.mrf.mxu0
    %v514 = vadd.f32 %v80, %v513
    %515 = vmatprep.mubr.f32.mxu0 0.0
    %516 = vmatmul.mubr.f32.gmra.mxu0 %v93
    %v517 = vpop.f32.mrf.mxu0
    %v518 = vadd.f32 %v76, %v517
    %v519 = vpop.f32.mrf.mxu0
    %v520 = vadd.f32 %v80, %v519
    %521 = vmatprep.mubr.f32.mxu0 0.0
    %522 = vmatmul.mubr.f32.gmra.mxu0 %v96
    %v523 = vpop.f32.mrf.mxu0
    %v524 = vadd.f32 %v76, %v523
    %v525 = vpop.f32.mrf.mxu0
    %v526 = vadd.f32 %v80, %v525
    %527 = vmatprep.mubr.f32.mxu0 0.0
    %528 = vmatmul.mubr.f32.gmra.mxu0 %v99
    %v529 = vpop.f32.mrf.mxu0
    %v530 = vadd.f32 %v76, %v529
    %v531 = vpop.f32.mrf.mxu0
    %v532 = vadd.f32 %v80, %v531
    %533 = vmatprep.mubr.f32.mxu0 0.0
    %534 = vmatmul.mubr.f32.gmra.mxu0 %v102
    %v535 = vpop.f32.mrf.mxu0
    %v536 = vadd.f32 %v76, %v535
    %v537 = vpop.f32.mrf.mxu0
    %v538 = vadd.f32 %v80, %v537
    %539 = vmatprep.mubr.f32.mxu0 0.0
    %540 = vmatmul.mubr.f32.gmra.mxu0 %v105
    %v541 = vpop.f32.mrf.mxu0
    %v542 = vadd.f32 %v76, %v541
    %v543 = vpop.f32.mrf.mxu0
    %v544 = vadd.f32 %v80, %v543
    %545 = vmatprep.mubr.f32.mxu0 0.0
    %546 = vmatmul.mubr.f32.gmra.mxu0 %v108
    %v547 = vpop.f32.mrf.mxu0
    %v548 = vadd.f32 %v76, %v547
    %v549 = vpop.f32.mrf.mxu0
    %v550 = vadd.f32 %v80, %v549
    %551 = vmatprep.mubr.f32.mxu0 0.0
    %552 = vmatmul.mubr.f32.gmra.mxu0 %v111
    %v553 = vpop.f32.mrf.mxu0
    %v554 = vadd.f32 %v76, %v553
    %v555 = vpop.f32.mrf.mxu0
    %v556 = vadd.f32 %v80, %v555
    %557 = vmatprep.mubr.f32.mxu0 0.0
    %558 = vmatmul.mubr.f32.gmra.mxu0 %v114
    %v559 = vpop.f32.mrf.mxu0
    %v560 = vadd.f32 %v76, %v559
    %v561 = vpop.f32.mrf.mxu0
    %v562 = vadd.f32 %v80, %v561
    %563 = vmatprep.mubr.f32.mxu0 0.0
    %564 = vmatmul.mubr.f32.gmra.mxu0 %v117
    %v565 = vpop.f32.mrf.mxu0
    %v566 = vadd.f32 %v76, %v565
    %v567 = vpop.f32.mrf.mxu0
    %v568 = vadd.f32 %v80, %v567
    %569 = vmatprep.mubr.f32.mxu0 0.0
    %570 = vmatmul.mubr.f32.gmra.mxu0 %v120
    %v571 = vpop.f32.mrf.mxu0
    %v572 = vadd.f32 %v76, %v571
    %v573 = vpop.f32.mrf.mxu0
    %v574 = vadd.f32 %v80, %v573
    %575 = vmatprep.mubr.f32.mxu0 0.0
    %576 = vmatmul.mubr.f32.gmra.mxu0 %v123
    %v577 = vpop.f32.mrf.mxu0
    %v578 = vadd.f32 %v76, %v577
    %v579 = vpop.f32.mrf.mxu0
    %v580 = vadd.f32 %v80, %v579
    %581 = vmatprep.mubr.f32.mxu0 0.0
    %582 = vmatmul.mubr.f32.gmra.mxu0 %v126
    %v583 = vpop.f32.mrf.mxu0
    %v584 = vadd.f32 %v76, %v583
    %v585 = vpop.f32.mrf.mxu0
    %v586 = vadd.f32 %v80, %v585
    %587 = vmatprep.mubr.f32.mxu0 0.0
    %588 = vmatmul.mubr.f32.gmra.mxu0 %v129
    %v589 = vpop.f32.mrf.mxu0
    %v590 = vadd.f32 %v76, %v589
    %v591 = vpop.f32.mrf.mxu0
    %v592 = vadd.f32 %v80, %v591
    %593 = vmatprep.mubr.f32.mxu0 0.0
    %594 = vmatmul.mubr.f32.gmra.mxu0 %v132
    %v595 = vpop.f32.mrf.mxu0
    %v596 = vadd.f32 %v76, %v595
    %v597 = vpop.f32.mrf.mxu0
    %v598 = vadd.f32 %v80, %v597
    %599 = vmatprep.mubr.f32.mxu0 0.0
    %600 = vmatmul.mubr.f32.gmra.mxu0 %v135
    %v601 = vpop.f32.mrf.mxu0
    %v602 = vadd.f32 %v76, %v601
    %v603 = vpop.f32.mrf.mxu0
    %v604 = vadd.f32 %v80, %v603
    %605 = vmatprep.mubr.f32.mxu0 0.0
    %606 = vmatmul.mubr.f32.gmra.mxu0 %v138
    %v607 = vpop.f32.mrf.mxu0
    %v608 = vadd.f32 %v76, %v607
    %v609 = vpop.f32.mrf.mxu0
    %v610 = vadd.f32 %v80, %v609
    %611 = vmatprep.mubr.f32.mxu0 0.0
    %612 = vmatmul.mubr.f32.gmra.mxu0 %v141
    %v613 = vpop.f32.mrf.mxu0
    %v614 = vadd.f32 %v76, %v613
    %v615 = vpop.f32.mrf.mxu0
    %v616 = vadd.f32 %v80, %v615
    %617 = vmatprep.mubr.f32.mxu0 0.0
    %618 = vmatmul.mubr.f32.gmra.mxu0 %v144
    %v619 = vpop.f32.mrf.mxu0
    %v620 = vadd.f32 %v76, %v619
    %v621 = vpop.f32.mrf.mxu0
    %v622 = vadd.f32 %v80, %v621
    %623 = vmatprep.mubr.f32.mxu0 0.0
    %624 = vmatmul.mubr.f32.gmra.mxu0 %v147
    %v625 = vpop.f32.mrf.mxu0
    %v626 = vadd.f32 %v76, %v625
    %v627 = vpop.f32.mrf.mxu0
    %v628 = vadd.f32 %v80, %v627
    %629 = vmatprep.mubr.f32.mxu0 0.0
    %630 = vmatmul.mubr.f32.gmra.mxu0 %v150
    %v631 = vpop.f32.mrf.mxu0
    %v632 = vadd.f32 %v76, %v631
    %v633 = vpop.f32.mrf.mxu0
    %v634 = vadd.f32 %v80, %v633
    %635 = vmatprep.mubr.f32.mxu0 0.0
    %636 = vmatmul.mubr.f32.gmra.mxu0 %v153
    %v637 = vpop.f32.mrf.mxu0
    %v638 = vadd.f32 %v76, %v637
    %v639 = vpop.f32.mrf.mxu0
    %v640 = vadd.f32 %v80, %v639
    %641 = vmatprep.mubr.f32.mxu0 0.0
    %642 = vmatmul.mubr.f32.gmra.mxu0 %v156
    %v643 = vpop.f32.mrf.mxu0
    %v644 = vadd.f32 %v76, %v643
    %v645 = vpop.f32.mrf.mxu0
    %v646 = vadd.f32 %v80, %v645
    %647 = vmatprep.mubr.f32.mxu0 0.0
    %648 = vmatmul.mubr.f32.gmra.mxu0 %v159
    %v649 = vpop.f32.mrf.mxu0
    %v650 = vadd.f32 %v76, %v649
    %v651 = vpop.f32.mrf.mxu0
    %v652 = vadd.f32 %v80, %v651
    %653 = vmatprep.mubr.f32.mxu0 0.0
    %654 = vmatmul.mubr.f32.gmra.mxu0 %v162
    %v655 = vpop.f32.mrf.mxu0
    %v656 = vadd.f32 %v76, %v655
    %v657 = vpop.f32.mrf.mxu0
    %v658 = vadd.f32 %v80, %v657
    %659 = vmatprep.mubr.f32.mxu0 0.0
    %660 = vmatmul.mubr.f32.gmra.mxu0 %v165
    %v661 = vpop.f32.mrf.mxu0
    %v662 = vadd.f32 %v76, %v661
    %v663 = vpop.f32.mrf.mxu0
    %v664 = vadd.f32 %v80, %v663
    %665 = vmatprep.mubr.f32.mxu0 0.0
    %666 = vmatmul.mubr.f32.gmra.mxu0 %v168
    %v667 = vpop.f32.mrf.mxu0
    %v668 = vadd.f32 %v76, %v667
    %v669 = vpop.f32.mrf.mxu0
    %v670 = vadd.f32 %v80, %v669
    %671 = vmatprep.mubr.f32.mxu0 0.0
    %672 = vmatmul.mubr.f32.gmra.mxu0 %v171
    %v673 = vpop.f32.mrf.mxu0
    %v674 = vadd.f32 %v76, %v673
    %v675 = vpop.f32.mrf.mxu0
    %v676 = vadd.f32 %v80, %v675
    %677 = vmatprep.mubr.f32.mxu0 0.0
    %678 = vmatmul.mubr.f32.gmra.mxu0 %v174
    %v679 = vpop.f32.mrf.mxu0
    %v680 = vadd.f32 %v76, %v679
    %v681 = vpop.f32.mrf.mxu0
    %v682 = vadd.f32 %v80, %v681
    %683 = vmatprep.mubr.f32.mxu0 0.0
    %684 = vmatmul.mubr.f32.gmra.mxu0 %v177
    %v685 = vpop.f32.mrf.mxu0
    %v686 = vadd.f32 %v76, %v685
    %v687 = vpop.f32.mrf.mxu0
    %v688 = vadd.f32 %v80, %v687
    %689 = vmatprep.mubr.f32.mxu0 0.0
    %690 = vmatmul.mubr.f32.gmra.mxu0 %v180
    %v691 = vpop.f32.mrf.mxu0
    %v692 = vadd.f32 %v76, %v691
    %v693 = vpop.f32.mrf.mxu0
    %v694 = vadd.f32 %v80, %v693
    %695 = vdwg.mxu0
    %v696 = vmul.f32 %v506, 0.5
    %v697 = vmul.f32 %v508, 0.5
    %v698 = vmul.f32 %v512, 0.5
    %v699 = vmul.f32 %v514, 0.5
    %v700 = vmul.f32 %v518, 0.5
    %v701 = vmul.f32 %v520, 0.5
    %v702 = vmul.f32 %v524, 0.5
    %v703 = vmul.f32 %v526, 0.5
    %v704 = vmul.f32 %v530, 0.5
    %v705 = vmul.f32 %v532, 0.5
    %v706 = vmul.f32 %v536, 0.5
    %v707 = vmul.f32 %v538, 0.5
    %v708 = vmul.f32 %v542, 0.5
    %v709 = vmul.f32 %v544, 0.5
    %v710 = vmul.f32 %v548, 0.5
    %v711 = vmul.f32 %v550, 0.5
    %v712 = vmul.f32 %v554, 0.5
    %v713 = vmul.f32 %v556, 0.5
    %v714 = vmul.f32 %v560, 0.5
    %v715 = vmul.f32 %v562, 0.5
    %v716 = vmul.f32 %v566, 0.5
    %v717 = vmul.f32 %v568, 0.5
    %v718 = vmul.f32 %v572, 0.5
    %v719 = vmul.f32 %v574, 0.5
    %v720 = vmul.f32 %v578, 0.5
    %v721 = vmul.f32 %v580, 0.5
    %v722 = vmul.f32 %v584, 0.5
    %v723 = vmul.f32 %v586, 0.5
    %v724 = vmul.f32 %v590, 0.5
    %v725 = vmul.f32 %v592, 0.5
    %v726 = vmul.f32 %v596, 0.5
    %v727 = vmul.f32 %v598, 0.5
    %v728 = vmul.f32 %v602, 0.5
    %v729 = vmul.f32 %v604, 0.5
    %v730 = vmul.f32 %v608, 0.5
    %v731 = vmul.f32 %v610, 0.5
    %v732 = vmul.f32 %v614, 0.5
    %v733 = vmul.f32 %v616, 0.5
    %v734 = vmul.f32 %v620, 0.5
    %v735 = vmul.f32 %v622, 0.5
    %v736 = vmul.f32 %v626, 0.5
    %v737 = vmul.f32 %v628, 0.5
    %v738 = vmul.f32 %v632, 0.5
    %v739 = vmul.f32 %v634, 0.5
    %v740 = vmul.f32 %v638, 0.5
    %v741 = vmul.f32 %v640, 0.5
    %v742 = vmul.f32 %v644, 0.5
    %v743 = vmul.f32 %v646, 0.5
    %v744 = vmul.f32 %v650, 0.5
    %v745 = vmul.f32 %v652, 0.5
    %v746 = vmul.f32 %v656, 0.5
    %v747 = vmul.f32 %v658, 0.5
    %v748 = vmul.f32 %v662, 0.5
    %v749 = vmul.f32 %v664, 0.5
    %v750 = vmul.f32 %v668, 0.5
    %v751 = vmul.f32 %v670, 0.5
    %v752 = vmul.f32 %v674, 0.5
    %v753 = vmul.f32 %v676, 0.5
    %v754 = vmul.f32 %v680, 0.5
    %v755 = vmul.f32 %v682, 0.5
    %v756 = vmul.f32 %v686, 0.5
    %v757 = vmul.f32 %v688, 0.5
    %v758 = vmul.f32 %v692, 0.5
    %v759 = vmul.f32 %v694, 0.5
    %v760 = vmul.f32 %v506, 0.70710677
    %v761 = vmul.f32 %v508, 0.70710677
    %v762 = vmul.f32 %v512, 0.70710677
    %v763 = vmul.f32 %v514, 0.70710677
    %v764 = vmul.f32 %v518, 0.70710677
    %v765 = vmul.f32 %v520, 0.70710677
    %v766 = vmul.f32 %v524, 0.70710677
    %v767 = vmul.f32 %v526, 0.70710677
    %v768 = vmul.f32 %v530, 0.70710677
    %v769 = vmul.f32 %v532, 0.70710677
    %v770 = vmul.f32 %v536, 0.70710677
    %v771 = vmul.f32 %v538, 0.70710677
    %v772 = vmul.f32 %v542, 0.70710677
    %v773 = vmul.f32 %v544, 0.70710677
    %v774 = vmul.f32 %v548, 0.70710677
    %v775 = vmul.f32 %v550, 0.70710677
    %v776 = vmul.f32 %v554, 0.70710677
    %v777 = vmul.f32 %v556, 0.70710677
    %v778 = vmul.f32 %v560, 0.70710677
    %v779 = vmul.f32 %v562, 0.70710677
    %v780 = vmul.f32 %v566, 0.70710677
    %v781 = vmul.f32 %v568, 0.70710677
    %v782 = vmul.f32 %v572, 0.70710677
    %v783 = vmul.f32 %v574, 0.70710677
    %v784 = vmul.f32 %v578, 0.70710677
    %v785 = vmul.f32 %v580, 0.70710677
    %v786 = vmul.f32 %v584, 0.70710677
    %v787 = vmul.f32 %v586, 0.70710677
    %v788 = vmul.f32 %v590, 0.70710677
    %v789 = vmul.f32 %v592, 0.70710677
    %v790 = vmul.f32 %v596, 0.70710677
    %v791 = vmul.f32 %v598, 0.70710677
    %v792 = vmul.f32 %v602, 0.70710677
    %v793 = vmul.f32 %v604, 0.70710677
    %v794 = vmul.f32 %v608, 0.70710677
    %v795 = vmul.f32 %v610, 0.70710677
    %v796 = vmul.f32 %v614, 0.70710677
    %v797 = vmul.f32 %v616, 0.70710677
    %v798 = vmul.f32 %v620, 0.70710677
    %v799 = vmul.f32 %v622, 0.70710677
    %v800 = vmul.f32 %v626, 0.70710677
    %v801 = vmul.f32 %v628, 0.70710677
    %v802 = vmul.f32 %v632, 0.70710677
    %v803 = vmul.f32 %v634, 0.70710677
    %v804 = vmul.f32 %v638, 0.70710677
    %v805 = vmul.f32 %v640, 0.70710677
    %v806 = vmul.f32 %v644, 0.70710677
    %v807 = vmul.f32 %v646, 0.70710677
    %v808 = vmul.f32 %v650, 0.70710677
    %v809 = vmul.f32 %v652, 0.70710677
    %v810 = vmul.f32 %v656, 0.70710677
    %v811 = vmul.f32 %v658, 0.70710677
    %v812 = vmul.f32 %v662, 0.70710677
    %v813 = vmul.f32 %v664, 0.70710677
    %v814 = vmul.f32 %v668, 0.70710677
    %v815 = vmul.f32 %v670, 0.70710677
    %v816 = vmul.f32 %v674, 0.70710677
    %v817 = vmul.f32 %v676, 0.70710677
    %v818 = vmul.f32 %v680, 0.70710677
    %v819 = vmul.f32 %v682, 0.70710677
    %v820 = vmul.f32 %v686, 0.70710677
    %v821 = vmul.f32 %v688, 0.70710677
    %v822 = vmul.f32 %v692, 0.70710677
    %v823 = vmul.f32 %v694, 0.70710677
    %v824 = verf.f32.pop %v760
    %v825 = verf.f32.pop %v761
    %v826 = verf.f32.pop %v762
    %v827 = verf.f32.pop %v763
    %v828 = verf.f32.pop %v764
    %v829 = verf.f32.pop %v765
    %v830 = verf.f32.pop %v766
    %v831 = verf.f32.pop %v767
    %v832 = verf.f32.pop %v768
    %v833 = verf.f32.pop %v769
    %v834 = verf.f32.pop %v770
    %v835 = verf.f32.pop %v771
    %v836 = verf.f32.pop %v772
    %v837 = verf.f32.pop %v773
    %v838 = verf.f32.pop %v774
    %v839 = verf.f32.pop %v775
    %v840 = verf.f32.pop %v776
    %v841 = verf.f32.pop %v777
    %v842 = verf.f32.pop %v778
    %v843 = verf.f32.pop %v779
    %v844 = verf.f32.pop %v780
    %v845 = verf.f32.pop %v781
    %v846 = verf.f32.pop %v782
    %v847 = verf.f32.pop %v783
    %v848 = verf.f32.pop %v784
    %v849 = verf.f32.pop %v785
    %v850 = verf.f32.pop %v786
    %v851 = verf.f32.pop %v787
    %v852 = verf.f32.pop %v788
    %v853 = verf.f32.pop %v789
    %v854 = verf.f32.pop %v790
    %v855 = verf.f32.pop %v791
    %v856 = verf.f32.pop %v792
    %v857 = verf.f32.pop %v793
    %v858 = verf.f32.pop %v794
    %v859 = verf.f32.pop %v795
    %v860 = verf.f32.pop %v796
    %v861 = verf.f32.pop %v797
    %v862 = verf.f32.pop %v798
    %v863 = verf.f32.pop %v799
    %v864 = verf.f32.pop %v800
    %v865 = verf.f32.pop %v801
    %v866 = verf.f32.pop %v802
    %v867 = verf.f32.pop %v803
    %v868 = verf.f32.pop %v804
    %v869 = verf.f32.pop %v805
    %v870 = verf.f32.pop %v806
    %v871 = verf.f32.pop %v807
    %v872 = verf.f32.pop %v808
    %v873 = verf.f32.pop %v809
    %v874 = verf.f32.pop %v810
    %v875 = verf.f32.pop %v811
    %v876 = verf.f32.pop %v812
    %v877 = verf.f32.pop %v813
    %v878 = verf.f32.pop %v814
    %v879 = verf.f32.pop %v815
    %v880 = verf.f32.pop %v816
    %v881 = verf.f32.pop %v817
    %v882 = verf.f32.pop %v818
    %v883 = verf.f32.pop %v819
    %v884 = verf.f32.pop %v820
    %v885 = verf.f32.pop %v821
    %v886 = verf.f32.pop %v822
    %v887 = verf.f32.pop %v823
    %v888 = vadd.f32 %v824, 1.0
    %v889 = vadd.f32 %v825, 1.0
    %v890 = vadd.f32 %v826, 1.0
    %v891 = vadd.f32 %v827, 1.0
    %v892 = vadd.f32 %v828, 1.0
    %v893 = vadd.f32 %v829, 1.0
    %v894 = vadd.f32 %v830, 1.0
    %v895 = vadd.f32 %v831, 1.0
    %v896 = vadd.f32 %v832, 1.0
    %v897 = vadd.f32 %v833, 1.0
    %v898 = vadd.f32 %v834, 1.0
    %v899 = vadd.f32 %v835, 1.0
    %v900 = vadd.f32 %v836, 1.0
    %v901 = vadd.f32 %v837, 1.0
    %v902 = vadd.f32 %v838, 1.0
    %v903 = vadd.f32 %v839, 1.0
    %v904 = vadd.f32 %v840, 1.0
    %v905 = vadd.f32 %v841, 1.0
    %v906 = vadd.f32 %v842, 1.0
    %v907 = vadd.f32 %v843, 1.0
    %v908 = vadd.f32 %v844, 1.0
    %v909 = vadd.f32 %v845, 1.0
    %v910 = vadd.f32 %v846, 1.0
    %v911 = vadd.f32 %v847, 1.0
    %v912 = vadd.f32 %v848, 1.0
    %v913 = vadd.f32 %v849, 1.0
    %v914 = vadd.f32 %v850, 1.0
    %v915 = vadd.f32 %v851, 1.0
    %v916 = vadd.f32 %v852, 1.0
    %v917 = vadd.f32 %v853, 1.0
    %v918 = vadd.f32 %v854, 1.0
    %v919 = vadd.f32 %v855, 1.0
    %v920 = vadd.f32 %v856, 1.0
    %v921 = vadd.f32 %v857, 1.0
    %v922 = vadd.f32 %v858, 1.0
    %v923 = vadd.f32 %v859, 1.0
    %v924 = vadd.f32 %v860, 1.0
    %v925 = vadd.f32 %v861, 1.0
    %v926 = vadd.f32 %v862, 1.0
    %v927 = vadd.f32 %v863, 1.0
    %v928 = vadd.f32 %v864, 1.0
    %v929 = vadd.f32 %v865, 1.0
    %v930 = vadd.f32 %v866, 1.0
    %v931 = vadd.f32 %v867, 1.0
    %v932 = vadd.f32 %v868, 1.0
    %v933 = vadd.f32 %v869, 1.0
    %v934 = vadd.f32 %v870, 1.0
    %v935 = vadd.f32 %v871, 1.0
    %v936 = vadd.f32 %v872, 1.0
    %v937 = vadd.f32 %v873, 1.0
    %v938 = vadd.f32 %v874, 1.0
    %v939 = vadd.f32 %v875, 1.0
    %v940 = vadd.f32 %v876, 1.0
    %v941 = vadd.f32 %v877, 1.0
    %v942 = vadd.f32 %v878, 1.0
    %v943 = vadd.f32 %v879, 1.0
    %v944 = vadd.f32 %v880, 1.0
    %v945 = vadd.f32 %v881, 1.0
    %v946 = vadd.f32 %v882, 1.0
    %v947 = vadd.f32 %v883, 1.0
    %v948 = vadd.f32 %v884, 1.0
    %v949 = vadd.f32 %v885, 1.0
    %v950 = vadd.f32 %v886, 1.0
    %v951 = vadd.f32 %v887, 1.0
    %v952 = vmul.f32 %v696, %v888
    %v953 = vmul.f32 %v697, %v889
    %v954 = vmul.f32 %v698, %v890
    %v955 = vmul.f32 %v699, %v891
    %v956 = vmul.f32 %v700, %v892
    %v957 = vmul.f32 %v701, %v893
    %v958 = vmul.f32 %v702, %v894
    %v959 = vmul.f32 %v703, %v895
    %v960 = vmul.f32 %v704, %v896
    %v961 = vmul.f32 %v705, %v897
    %v962 = vmul.f32 %v706, %v898
    %v963 = vmul.f32 %v707, %v899
    %v964 = vmul.f32 %v708, %v900
    %v965 = vmul.f32 %v709, %v901
    %v966 = vmul.f32 %v710, %v902
    %v967 = vmul.f32 %v711, %v903
    %v968 = vmul.f32 %v712, %v904
    %v969 = vmul.f32 %v713, %v905
    %v970 = vmul.f32 %v714, %v906
    %v971 = vmul.f32 %v715, %v907
    %v972 = vmul.f32 %v716, %v908
    %v973 = vmul.f32 %v717, %v909
    %v974 = vmul.f32 %v718, %v910
    %v975 = vmul.f32 %v719, %v911
    %v976 = vmul.f32 %v720, %v912
    %v977 = vmul.f32 %v721, %v913
    %v978 = vmul.f32 %v722, %v914
    %v979 = vmul.f32 %v723, %v915
    %v980 = vmul.f32 %v724, %v916
    %v981 = vmul.f32 %v725, %v917
    %v982 = vmul.f32 %v726, %v918
    %v983 = vmul.f32 %v727, %v919
    %v984 = vmul.f32 %v728, %v920
    %v985 = vmul.f32 %v729, %v921
    %v986 = vmul.f32 %v730, %v922
    %v987 = vmul.f32 %v731, %v923
    %v988 = vmul.f32 %v732, %v924
    %v989 = vmul.f32 %v733, %v925
    %v990 = vmul.f32 %v734, %v926
    %v991 = vmul.f32 %v735, %v927
    %v992 = vmul.f32 %v736, %v928
    %v993 = vmul.f32 %v737, %v929
    %v994 = vmul.f32 %v738, %v930
    %v995 = vmul.f32 %v739, %v931
    %v996 = vmul.f32 %v740, %v932
    %v997 = vmul.f32 %v741, %v933
    %v998 = vmul.f32 %v742, %v934
    %v999 = vmul.f32 %v743, %v935
    %v1000 = vmul.f32 %v744, %v936
    %v1001 = vmul.f32 %v745, %v937
    %v1002 = vmul.f32 %v746, %v938
    %v1003 = vmul.f32 %v747, %v939
    %v1004 = vmul.f32 %v748, %v940
    %v1005 = vmul.f32 %v749, %v941
    %v1006 = vmul.f32 %v750, %v942
    %v1007 = vmul.f32 %v751, %v943
    %v1008 = vmul.f32 %v752, %v944
    %v1009 = vmul.f32 %v753, %v945
    %v1010 = vmul.f32 %v754, %v946
    %v1011 = vmul.f32 %v755, %v947
    %v1012 = vmul.f32 %v756, %v948
    %v1013 = vmul.f32 %v757, %v949
    %v1014 = vmul.f32 %v758, %v950
    %v1015 = vmul.f32 %v759, %v951
    %v1016 = vmul.f32 %v249, %v952
    %v1017 = vmul.f32 %v251, %v953
    %v1018 = vmul.f32 %v255, %v954
    %v1019 = vmul.f32 %v257, %v955
    %v1020 = vmul.f32 %v261, %v956
    %v1021 = vmul.f32 %v263, %v957
    %v1022 = vmul.f32 %v267, %v958
    %v1023 = vmul.f32 %v269, %v959
    %v1024 = vmul.f32 %v273, %v960
    %v1025 = vmul.f32 %v275, %v961
    %v1026 = vmul.f32 %v279, %v962
    %v1027 = vmul.f32 %v281, %v963
    %v1028 = vmul.f32 %v285, %v964
    %v1029 = vmul.f32 %v287, %v965
    %v1030 = vmul.f32 %v291, %v966
    %v1031 = vmul.f32 %v293, %v967
    %v1032 = vmul.f32 %v297, %v968
    %v1033 = vmul.f32 %v299, %v969
    %v1034 = vmul.f32 %v303, %v970
    %v1035 = vmul.f32 %v305, %v971
    %v1036 = vmul.f32 %v309, %v972
    %v1037 = vmul.f32 %v311, %v973
    %v1038 = vmul.f32 %v315, %v974
    %v1039 = vmul.f32 %v317, %v975
    %v1040 = vmul.f32 %v321, %v976
    %v1041 = vmul.f32 %v323, %v977
    %v1042 = vmul.f32 %v327, %v978
    %v1043 = vmul.f32 %v329, %v979
    %v1044 = vmul.f32 %v333, %v980
    %v1045 = vmul.f32 %v335, %v981
    %v1046 = vmul.f32 %v339, %v982
    %v1047 = vmul.f32 %v341, %v983
    %v1048 = vmul.f32 %v345, %v984
    %v1049 = vmul.f32 %v347, %v985
    %v1050 = vmul.f32 %v351, %v986
    %v1051 = vmul.f32 %v353, %v987
    %v1052 = vmul.f32 %v357, %v988
    %v1053 = vmul.f32 %v359, %v989
    %v1054 = vmul.f32 %v363, %v990
    %v1055 = vmul.f32 %v365, %v991
    %v1056 = vmul.f32 %v369, %v992
    %v1057 = vmul.f32 %v371, %v993
    %v1058 = vmul.f32 %v375, %v994
    %v1059 = vmul.f32 %v377, %v995
    %v1060 = vmul.f32 %v381, %v996
    %v1061 = vmul.f32 %v383, %v997
    %v1062 = vmul.f32 %v387, %v998
    %v1063 = vmul.f32 %v389, %v999
    %v1064 = vmul.f32 %v393, %v1000
    %v1065 = vmul.f32 %v395, %v1001
    %v1066 = vmul.f32 %v399, %v1002
    %v1067 = vmul.f32 %v401, %v1003
    %v1068 = vmul.f32 %v405, %v1004
    %v1069 = vmul.f32 %v407, %v1005
    %v1070 = vmul.f32 %v411, %v1006
    %v1071 = vmul.f32 %v413, %v1007
    %v1072 = vmul.f32 %v417, %v1008
    %v1073 = vmul.f32 %v419, %v1009
    %v1074 = vmul.f32 %v423, %v1010
    %v1075 = vmul.f32 %v425, %v1011
    %v1076 = vmul.f32 %v429, %v1012
    %v1077 = vmul.f32 %v431, %v1013
    %v1078 = vmul.f32 %v435, %v1014
    %v1079 = vmul.f32 %v437, %v1015
    %1080 = vst [vmem:[#allocation2] sm:$0xff] %v1016
    %1081 = vst [vmem:[#allocation2 + $0x8] sm:$0xff] %v1017
    %1082 = vst [vmem:[#allocation2 + $0x10] sm:$0xff] %v1018
    %1083 = vst [vmem:[#allocation2 + $0x18] sm:$0xff] %v1019
    %1084 = vst [vmem:[#allocation2 + $0x20] sm:$0xff] %v1020
    %1085 = vst [vmem:[#allocation2 + $0x28] sm:$0xff] %v1021
    %1086 = vst [vmem:[#allocation2 + $0x30] sm:$0xff] %v1022
    %1087 = vst [vmem:[#allocation2 + $0x38] sm:$0xff] %v1023
    %1088 = vst [vmem:[#allocation2 + $0x40] sm:$0xff] %v1024
    %1089 = vst [vmem:[#allocation2 + $0x48] sm:$0xff] %v1025
    %1090 = vst [vmem:[#allocation2 + $0x50] sm:$0xff] %v1026
    %1091 = vst [vmem:[#allocation2 + $0x58] sm:$0xff] %v1027
    %1092 = vst [vmem:[#allocation2 + $0x60] sm:$0xff] %v1028
    %1093 = vst [vmem:[#allocation2 + $0x68] sm:$0xff] %v1029
    %1094 = vst [vmem:[#allocation2 + $0x70] sm:$0xff] %v1030
    %1095 = vst [vmem:[#allocation2 + $0x78] sm:$0xff] %v1031
    %1096 = vst [vmem:[#allocation2 + $0x80] sm:$0xff] %v1032
    %1097 = vst [vmem:[#allocation2 + $0x88] sm:$0xff] %v1033
    %1098 = vst [vmem:[#allocation2 + $0x90] sm:$0xff] %v1034
    %1099 = vst [vmem:[#allocation2 + $0x98] sm:$0xff] %v1035
    %1100 = vst [vmem:[#allocation2 + $0xa0] sm:$0xff] %v1036
    %1101 = vst [vmem:[#allocation2 + $0xa8] sm:$0xff] %v1037
    %1102 = vst [vmem:[#allocation2 + $0xb0] sm:$0xff] %v1038
    %1103 = vst [vmem:[#allocation2 + $0xb8] sm:$0xff] %v1039
    %1104 = vst [vmem:[#allocation2 + $0xc0] sm:$0xff] %v1040
    %1105 = vst [vmem:[#allocation2 + $0xc8] sm:$0xff] %v1041
    %1106 = vst [vmem:[#allocation2 + $0xd0] sm:$0xff] %v1042
    %1107 = vst [vmem:[#allocation2 + $0xd8] sm:$0xff] %v1043
    %1108 = vst [vmem:[#allocation2 + $0xe0] sm:$0xff] %v1044
    %1109 = vst [vmem:[#allocation2 + $0xe8] sm:$0xff] %v1045
    %1110 = vst [vmem:[#allocation2 + $0xf0] sm:$0xff] %v1046
    %1111 = vst [vmem:[#allocation2 + $0xf8] sm:$0xff] %v1047
    %1112 = vst [vmem:[#allocation2 + $0x100] sm:$0xff] %v1048
    %1113 = vst [vmem:[#allocation2 + $0x108] sm:$0xff] %v1049
    %1114 = vst [vmem:[#allocation2 + $0x110] sm:$0xff] %v1050
    %1115 = vst [vmem:[#allocation2 + $0x118] sm:$0xff] %v1051
    %1116 = vst [vmem:[#allocation2 + $0x120] sm:$0xff] %v1052
    %1117 = vst [vmem:[#allocation2 + $0x128] sm:$0xff] %v1053
    %1118 = vst [vmem:[#allocation2 + $0x130] sm:$0xff] %v1054
    %1119 = vst [vmem:[#allocation2 + $0x138] sm:$0xff] %v1055
    %1120 = vst [vmem:[#allocation2 + $0x140] sm:$0xff] %v1056
    %1121 = vst [vmem:[#allocation2 + $0x148] sm:$0xff] %v1057
    %1122 = vst [vmem:[#allocation2 + $0x150] sm:$0xff] %v1058
    %1123 = vst [vmem:[#allocation2 + $0x158] sm:$0xff] %v1059
    %1124 = vst [vmem:[#allocation2 + $0x160] sm:$0xff] %v1060
    %1125 = vst [vmem:[#allocation2 + $0x168] sm:$0xff] %v1061
    %1126 = vst [vmem:[#allocation2 + $0x170] sm:$0xff] %v1062
    %1127 = vst [vmem:[#allocation2 + $0x178] sm:$0xff] %v1063
    %1128 = vst [vmem:[#allocation2 + $0x180] sm:$0xff] %v1064
    %1129 = vst [vmem:[#allocation2 + $0x188] sm:$0xff] %v1065
    %1130 = vst [vmem:[#allocation2 + $0x190] sm:$0xff] %v1066
    %1131 = vst [vmem:[#allocation2 + $0x198] sm:$0xff] %v1067
    %1132 = vst [vmem:[#allocation2 + $0x1a0] sm:$0xff] %v1068
    %1133 = vst [vmem:[#allocation2 + $0x1a8] sm:$0xff] %v1069
    %1134 = vst [vmem:[#allocation2 + $0x1b0] sm:$0xff] %v1070
    %1135 = vst [vmem:[#allocation2 + $0x1b8] sm:$0xff] %v1071
    %1136 = vst [vmem:[#allocation2 + $0x1c0] sm:$0xff] %v1072
    %1137 = vst [vmem:[#allocation2 + $0x1c8] sm:$0xff] %v1073
    %1138 = vst [vmem:[#allocation2 + $0x1d0] sm:$0xff] %v1074
    %1139 = vst [vmem:[#allocation2 + $0x1d8] sm:$0xff] %v1075
    %1140 = vst [vmem:[#allocation2 + $0x1e0] sm:$0xff] %v1076
    %1141 = vst [vmem:[#allocation2 + $0x1e8] sm:$0xff] %v1077
    %1142 = vst [vmem:[#allocation2 + $0x1f0] sm:$0xff] %v1078
    %1143 = vst [vmem:[#allocation2 + $0x1f8] sm:$0xff] %v1079
    // Predicated region
    $region14: #{tpu_custom_call.1} parent=1 // pred_check
      _
    $region15: #{tpu_custom_call.1} parent=1 // pred_check_branch
      %1145 = sbr.rel (0) target = $region17
    $region16: #{tpu_custom_call.1} parent=1 // pred_region
      %s1147 = ssub.s32 8192, 8192
      %1148 = vsyncadd [#allocation3], %s1147
      %s1149 = sshll.u32 [#allocation2], 4
      %s1150 = int_to_ptr.vmem [resolvable:$true] %s1149
      %1155 = dma.vmem_to_hbm [thread:$0]  %s1150, 8192, %s3, [#allocation3], 256, 256, 16
    $region17: #{tpu_custom_call.1} parent=1 // pred_fallthru
      _
    // Predicated region
    $region18: #{tpu_custom_call.1} parent=1 // pred_check
      _
    $region19: #{tpu_custom_call.1} parent=1 // pred_check_branch
      %1157 = sbr.rel (0) target = $region21
    $region20: #{tpu_custom_call.1} parent=1 // pred_region
      %1158 = dma.done [#allocation3], 8192
    $region21: #{tpu_custom_call.1} parent=1 // pred_fallthru
      _
    %1159 = vsyncpa [#allocation3], 1

</llo_original>
